<compile_context>
chip_gen: v7x
topology: tpu7x:2x2x1
jax: 0.10.0
libtpu: 0.0.40
codegen_flags: <defaults>
</compile_context>

<pallas_src>
import jax
import jax.numpy as jnp
from jax.experimental import pallas as pl
from jax.experimental.pallas import tpu as pltpu

EPS = 1e-5
NEG_SLOPE = 0.01  # F.leaky_relu default


def _bn_lrelu_t(h, gamma_col, beta_col):
    """Training-mode BatchNorm1d + LeakyReLU on feature-major h of shape (d, B).

    Fused into a per-feature scale/shift (2 VPU ops per element); rsqrt goes
    to the EUP (free slot); the batch mean/var are lane reductions (XLU).
    """
    mean = jnp.mean(h, axis=1, keepdims=True)                                # (d, 1)
    var = jnp.maximum(jnp.mean(h * h, axis=1, keepdims=True) - mean * mean, 0.0)
    scale = gamma_col * jax.lax.rsqrt(var + EPS)                             # (d, 1)
    shift = beta_col - mean * scale                                          # (d, 1)
    y = h * scale + shift
    return jnp.where(y >= 0, y, NEG_SLOPE * y)


def _make_kernel(d1, d2, d3):
    # Contract the last dims of both operands: W (out, in) x X (B, in) -> (out, B).
    nt = (((1,), (1,)), ((), ()))

    def kernel(x_ref, w1_ref, w2_ref, w3_ref, p_ref, o_ref):
        x = x_ref[...]          # (B, d0)  batch-major input (as supplied)
        p = p_ref[...]          # (d1, 8)  packed per-feature vectors (one DMA)

        # Layer 1: feature-major h = W1 @ x^T; the transpose is folded into
        # the MXU contraction (no explicit transpose op).  Bias dropped (BN
        # cancels it exactly).
        h = jax.lax.dot_general(w1_ref[...], x, nt,
                                preferred_element_type=jnp.float32)          # (d1, B)
        h = _bn_lrelu_t(h, p[:d1, 0:1], p[:d1, 1:2])

        h = jnp.dot(w2_ref[...], h, preferred_element_type=jnp.float32)      # (d2, B)
        h = _bn_lrelu_t(h, p[:d2, 2:3], p[:d2, 3:4])

        h = jnp.dot(w3_ref[...], h, preferred_element_type=jnp.float32)      # (d3, B)
        h = _bn_lrelu_t(h, p[:d3, 4:5], p[:d3, 5:6])

        # Layer 4 (d3 -> 1): tiny K/N -> skip the MXU; VPU mul + sublane reduce.
        w4_col = p[:d3, 6:7]                                                 # (d3, 1)
        b4 = p[0:1, 7:8]                                                     # (1, 1)
        o_ref[...] = jnp.sum(h * w4_col, axis=0, keepdims=True) + b4         # (1, B)

    return kernel


@jax.jit
def net_forward(x, w1, w2, w3, packed):
    """x: (B, d0) f32; w1/w2/w3 in PyTorch (out, in) layout; packed: (d1, 8)."""
    B = x.shape[0]
    d1, d2, d3 = w1.shape[0], w2.shape[0], w3.shape[0]
    vmem = pl.BlockSpec(memory_space=pltpu.MemorySpace.VMEM)
    out_t = pl.pallas_call(
        _make_kernel(d1, d2, d3),
        out_shape=jax.ShapeDtypeStruct((1, B), jnp.float32),   # lane-dense output
        in_specs=[vmem] * 5,
        out_specs=vmem,
        compiler_params=pltpu.CompilerParams(
            vmem_limit_bytes=48 * 1024 * 1024),  # > default scoped, safe on v7x
    )(x, w1, w2, w3, packed)
    return out_t.reshape(B, 1)


def init_params(key, n, c, n_split=4):
    """PyTorch-style init; weights kept in torch layout (out_features, in_features)."""
    d0 = n * (n - 1) // 2
    d1 = 2 + 3 * n * (n - 1) // 4
    if d1 % n_split != 0:
        d1 -= d1 % n_split
    d2, d3 = c, c // 20
    dims = [(d0, d1), (d1, d2), (d2, d3), (d3, 1)]

    ws, bs = [], []
    keys = jax.random.split(key, 2 * len(dims))
    for i, (fan_in, fan_out) in enumerate(dims):
        bound = 1.0 / (fan_in ** 0.5)
        ws.append(jax.random.uniform(keys[2 * i], (fan_out, fan_in),
                                     jnp.float32, -bound, bound))
        bs.append(jax.random.uniform(keys[2 * i + 1], (fan_out,),
                                     jnp.float32, -bound, bound))
    return ws, bs, (d0, d1, d2, d3)


def pack_small_vectors(gammas, betas, w4, b4, dims):
    """One (d1, 8) array: columns = [g1, be1, g2, be2, g3, be3, w4, b4]."""
    _, d1, _, _ = dims
    cols = [gammas[0], betas[0], gammas[1], betas[1], gammas[2], betas[2],
            w4[0, :], b4]
    packed = jnp.zeros((d1, 8), jnp.float32)
    for j, v in enumerate(cols):
        packed = packed.at[: v.shape[0], j].set(v)
    return packed


def _reference(x, ws, bs, gammas, betas):
    """Pure-JAX reference with the un-fused math INCLUDING the b1..b3 biases
    (the kernel drops them; training-mode BN cancels them exactly)."""
    def bn_lrelu(h, g, b):
        mean = jnp.mean(h, axis=0, keepdims=True)
        var = jnp.mean((h - mean) ** 2, axis=0, keepdims=True)
        h = g * (h - mean) / jnp.sqrt(var + EPS) + b
        return jnp.where(h >= 0, h, NEG_SLOPE * h)

    h = bn_lrelu(x @ ws[0].T + bs[0], gammas[0], betas[0])
    h = bn_lrelu(h @ ws[1].T + bs[1], gammas[1], betas[1])
    h = bn_lrelu(h @ ws[2].T + bs[2], gammas[2], betas[2])
    return h @ ws[3].T + bs[3]


if __name__ == "__main__":
    n, c, n_split = 8, 40, 4      # d0=28, dim_1=44, c=40, c//20=2
    batch = 8

    key = jax.random.PRNGKey(0)
    k_param, k_x, k_g, k_b = jax.random.split(key, 4)
    ws, bs, dims = init_params(k_param, n, c, n_split)
    d0, d1, d2, d3 = dims

    # Non-trivial BN affine params (module default is ones/zeros) so the fused
    # scale/shift path is actually exercised by the correctness check.
    gammas = [jax.random.uniform(jax.random.fold_in(k_g, i), (d,),
                                 jnp.float32, 0.5, 1.5)
              for i, d in enumerate((d1, d2, d3))]
    betas = [0.1 * jax.random.normal(jax.random.fold_in(k_b, i), (d,),
                                     jnp.float32)
             for i, d in enumerate((d1, d2, d3))]

    x = jax.random.normal(k_x, (batch, d0), dtype=jnp.float32)
    packed = pack_small_vectors(gammas, betas, ws[3], bs[3], dims)

    out = net_forward(x, ws[0], ws[1], ws[2], packed)
    out = jax.block_until_ready(out)

    ref = _reference(x, ws, bs, gammas, betas)
    assert out.shape == (batch, 1), out.shape
    assert jnp.allclose(out, ref, atol=1e-4, rtol=1e-4), (out, ref)

    print("KERNEL_OK")
</pallas_src>

<mosaic_0001>
module attributes {stable_mosaic.version = 11 : i64} {
  func.func @kernel(%arg0: memref<8x28xf32, #tpu.memory_space<vmem>>, %arg1: memref<44x28xf32, #tpu.memory_space<vmem>>, %arg2: memref<40x44xf32, #tpu.memory_space<vmem>>, %arg3: memref<2x40xf32, #tpu.memory_space<vmem>>, %arg4: memref<44x8xf32, #tpu.memory_space<vmem>>, %arg5: memref<1x8xf32, #tpu.memory_space<vmem>>) attributes {dimension_semantics = [], scalar_prefetch = 0 : i64, scratch_operands = 0 : i64, tpu.core_type = #tpu.core_type<tc>} {
    %c0 = arith.constant 0 : index
    %c0_0 = arith.constant 0 : index
    %0 = vector.load %arg0[%c0, %c0_0] : memref<8x28xf32, #tpu.memory_space<vmem>>, vector<8x28xf32>
    %c0_1 = arith.constant 0 : index
    %c0_2 = arith.constant 0 : index
    %1 = vector.load %arg4[%c0_1, %c0_2] : memref<44x8xf32, #tpu.memory_space<vmem>>, vector<44x8xf32>
    %c0_3 = arith.constant 0 : index
    %c0_4 = arith.constant 0 : index
    %2 = vector.load %arg1[%c0_3, %c0_4] : memref<44x28xf32, #tpu.memory_space<vmem>>, vector<44x28xf32>
    %cst = arith.constant dense<0.000000e+00> : vector<44x8xf32>
    %3 = tpu.matmul %2, %0, %cst {dimension_numbers = #tpu.dot_dimension_numbers<[1], [1], [0], [0], [0, 0, 1, 0], [], []>} : vector<44x28xf32>, vector<8x28xf32>, vector<44x8xf32> -> vector<44x8xf32>
    %4 = vector.extract_strided_slice %1 {offsets = [0, 0], sizes = [44, 1], strides = [1, 1]} : vector<44x8xf32> to vector<44x1xf32>
    %5 = vector.extract_strided_slice %1 {offsets = [0, 1], sizes = [44, 1], strides = [1, 1]} : vector<44x8xf32> to vector<44x1xf32>
    %cst_5 = arith.constant dense<0.000000e+00> : vector<44xf32>
    %6 = vector.multi_reduction <add>, %3, %cst_5 [1] : vector<44x8xf32> to vector<44xf32>
    %7 = vector.shape_cast %6 : vector<44xf32> to vector<44x1xf32>
    %cst_6 = arith.constant 8.000000e+00 : f32
    %8 = vector.broadcast %cst_6 : f32 to vector<44x1xf32>
    %9 = arith.divf %7, %8 : vector<44x1xf32>
    %10 = arith.mulf %3, %3 : vector<44x8xf32>
    %cst_7 = arith.constant dense<0.000000e+00> : vector<44xf32>
    %11 = vector.multi_reduction <add>, %10, %cst_7 [1] : vector<44x8xf32> to vector<44xf32>
    %12 = vector.shape_cast %11 : vector<44xf32> to vector<44x1xf32>
    %cst_8 = arith.constant 8.000000e+00 : f32
    %13 = vector.broadcast %cst_8 : f32 to vector<44x1xf32>
    %14 = arith.divf %12, %13 : vector<44x1xf32>
    %15 = arith.mulf %9, %9 : vector<44x1xf32>
    %16 = arith.subf %14, %15 : vector<44x1xf32>
    %cst_9 = arith.constant 0.000000e+00 : f32
    %17 = vector.broadcast %cst_9 : f32 to vector<44x1xf32>
    %18 = arith.maximumf %16, %17 : vector<44x1xf32>
    %cst_10 = arith.constant 9.99999974E-6 : f32
    %19 = vector.broadcast %cst_10 : f32 to vector<44x1xf32>
    %20 = arith.addf %18, %19 : vector<44x1xf32>
    %21 = math.rsqrt %20 : vector<44x1xf32>
    %22 = arith.mulf %4, %21 : vector<44x1xf32>
    %23 = arith.mulf %9, %22 : vector<44x1xf32>
    %24 = arith.subf %5, %23 : vector<44x1xf32>
    %25 = vector.broadcast %22 : vector<44x1xf32> to vector<44x8xf32>
    %26 = arith.mulf %3, %25 : vector<44x8xf32>
    %27 = vector.broadcast %24 : vector<44x1xf32> to vector<44x8xf32>
    %28 = arith.addf %26, %27 : vector<44x8xf32>
    %cst_11 = arith.constant 0.000000e+00 : f32
    %29 = vector.broadcast %cst_11 : f32 to vector<44x8xf32>
    %30 = arith.cmpf oge, %28, %29 : vector<44x8xf32>
    %cst_12 = arith.constant 0.00999999977 : f32
    %31 = vector.broadcast %cst_12 : f32 to vector<44x8xf32>
    %32 = arith.mulf %31, %28 : vector<44x8xf32>
    %33 = arith.select %30, %28, %32 : vector<44x8xi1>, vector<44x8xf32>
    %c0_13 = arith.constant 0 : index
    %c0_14 = arith.constant 0 : index
    %34 = vector.load %arg2[%c0_13, %c0_14] : memref<40x44xf32, #tpu.memory_space<vmem>>, vector<40x44xf32>
    %cst_15 = arith.constant dense<0.000000e+00> : vector<40x8xf32>
    %35 = tpu.matmul %34, %33, %cst_15 {dimension_numbers = #tpu.dot_dimension_numbers<[1], [0], [0], [1], [0, 0, 1, 1], [], []>} : vector<40x44xf32>, vector<44x8xf32>, vector<40x8xf32> -> vector<40x8xf32>
    %36 = vector.extract_strided_slice %1 {offsets = [0, 2], sizes = [40, 1], strides = [1, 1]} : vector<44x8xf32> to vector<40x1xf32>
    %37 = vector.extract_strided_slice %1 {offsets = [0, 3], sizes = [40, 1], strides = [1, 1]} : vector<44x8xf32> to vector<40x1xf32>
    %cst_16 = arith.constant dense<0.000000e+00> : vector<40xf32>
    %38 = vector.multi_reduction <add>, %35, %cst_16 [1] : vector<40x8xf32> to vector<40xf32>
    %39 = vector.shape_cast %38 : vector<40xf32> to vector<40x1xf32>
    %cst_17 = arith.constant 8.000000e+00 : f32
    %40 = vector.broadcast %cst_17 : f32 to vector<40x1xf32>
    %41 = arith.divf %39, %40 : vector<40x1xf32>
    %42 = arith.mulf %35, %35 : vector<40x8xf32>
    %cst_18 = arith.constant dense<0.000000e+00> : vector<40xf32>
    %43 = vector.multi_reduction <add>, %42, %cst_18 [1] : vector<40x8xf32> to vector<40xf32>
    %44 = vector.shape_cast %43 : vector<40xf32> to vector<40x1xf32>
    %cst_19 = arith.constant 8.000000e+00 : f32
    %45 = vector.broadcast %cst_19 : f32 to vector<40x1xf32>
    %46 = arith.divf %44, %45 : vector<40x1xf32>
    %47 = arith.mulf %41, %41 : vector<40x1xf32>
    %48 = arith.subf %46, %47 : vector<40x1xf32>
    %cst_20 = arith.constant 0.000000e+00 : f32
    %49 = vector.broadcast %cst_20 : f32 to vector<40x1xf32>
    %50 = arith.maximumf %48, %49 : vector<40x1xf32>
    %cst_21 = arith.constant 9.99999974E-6 : f32
    %51 = vector.broadcast %cst_21 : f32 to vector<40x1xf32>
    %52 = arith.addf %50, %51 : vector<40x1xf32>
    %53 = math.rsqrt %52 : vector<40x1xf32>
    %54 = arith.mulf %36, %53 : vector<40x1xf32>
    %55 = arith.mulf %41, %54 : vector<40x1xf32>
    %56 = arith.subf %37, %55 : vector<40x1xf32>
    %57 = vector.broadcast %54 : vector<40x1xf32> to vector<40x8xf32>
    %58 = arith.mulf %35, %57 : vector<40x8xf32>
    %59 = vector.broadcast %56 : vector<40x1xf32> to vector<40x8xf32>
    %60 = arith.addf %58, %59 : vector<40x8xf32>
    %cst_22 = arith.constant 0.000000e+00 : f32
    %61 = vector.broadcast %cst_22 : f32 to vector<40x8xf32>
    %62 = arith.cmpf oge, %60, %61 : vector<40x8xf32>
    %cst_23 = arith.constant 0.00999999977 : f32
    %63 = vector.broadcast %cst_23 : f32 to vector<40x8xf32>
    %64 = arith.mulf %63, %60 : vector<40x8xf32>
    %65 = arith.select %62, %60, %64 : vector<40x8xi1>, vector<40x8xf32>
    %c0_24 = arith.constant 0 : index
    %c0_25 = arith.constant 0 : index
    %66 = vector.load %arg3[%c0_24, %c0_25] : memref<2x40xf32, #tpu.memory_space<vmem>>, vector<2x40xf32>
    %cst_26 = arith.constant dense<0.000000e+00> : vector<2x8xf32>
    %67 = tpu.matmul %66, %65, %cst_26 {dimension_numbers = #tpu.dot_dimension_numbers<[1], [0], [0], [1], [0, 0, 1, 1], [], []>} : vector<2x40xf32>, vector<40x8xf32>, vector<2x8xf32> -> vector<2x8xf32>
    %68 = vector.extract_strided_slice %1 {offsets = [0, 4], sizes = [2, 1], strides = [1, 1]} : vector<44x8xf32> to vector<2x1xf32>
    %69 = vector.extract_strided_slice %1 {offsets = [0, 5], sizes = [2, 1], strides = [1, 1]} : vector<44x8xf32> to vector<2x1xf32>
    %cst_27 = arith.constant dense<0.000000e+00> : vector<2xf32>
    %70 = vector.multi_reduction <add>, %67, %cst_27 [1] : vector<2x8xf32> to vector<2xf32>
    %71 = vector.shape_cast %70 : vector<2xf32> to vector<2x1xf32>
    %cst_28 = arith.constant 8.000000e+00 : f32
    %72 = vector.broadcast %cst_28 : f32 to vector<2x1xf32>
    %73 = arith.divf %71, %72 : vector<2x1xf32>
    %74 = arith.mulf %67, %67 : vector<2x8xf32>
    %cst_29 = arith.constant dense<0.000000e+00> : vector<2xf32>
    %75 = vector.multi_reduction <add>, %74, %cst_29 [1] : vector<2x8xf32> to vector<2xf32>
    %76 = vector.shape_cast %75 : vector<2xf32> to vector<2x1xf32>
    %cst_30 = arith.constant 8.000000e+00 : f32
    %77 = vector.broadcast %cst_30 : f32 to vector<2x1xf32>
    %78 = arith.divf %76, %77 : vector<2x1xf32>
    %79 = arith.mulf %73, %73 : vector<2x1xf32>
    %80 = arith.subf %78, %79 : vector<2x1xf32>
    %cst_31 = arith.constant 0.000000e+00 : f32
    %81 = vector.broadcast %cst_31 : f32 to vector<2x1xf32>
    %82 = arith.maximumf %80, %81 : vector<2x1xf32>
    %cst_32 = arith.constant 9.99999974E-6 : f32
    %83 = vector.broadcast %cst_32 : f32 to vector<2x1xf32>
    %84 = arith.addf %82, %83 : vector<2x1xf32>
    %85 = math.rsqrt %84 : vector<2x1xf32>
    %86 = arith.mulf %68, %85 : vector<2x1xf32>
    %87 = arith.mulf %73, %86 : vector<2x1xf32>
    %88 = arith.subf %69, %87 : vector<2x1xf32>
    %89 = vector.broadcast %86 : vector<2x1xf32> to vector<2x8xf32>
    %90 = arith.mulf %67, %89 : vector<2x8xf32>
    %91 = vector.broadcast %88 : vector<2x1xf32> to vector<2x8xf32>
    %92 = arith.addf %90, %91 : vector<2x8xf32>
    %cst_33 = arith.constant 0.000000e+00 : f32
    %93 = vector.broadcast %cst_33 : f32 to vector<2x8xf32>
    %94 = arith.cmpf oge, %92, %93 : vector<2x8xf32>
    %cst_34 = arith.constant 0.00999999977 : f32
    %95 = vector.broadcast %cst_34 : f32 to vector<2x8xf32>
    %96 = arith.mulf %95, %92 : vector<2x8xf32>
    %97 = arith.select %94, %92, %96 : vector<2x8xi1>, vector<2x8xf32>
    %98 = vector.extract_strided_slice %1 {offsets = [0, 6], sizes = [2, 1], strides = [1, 1]} : vector<44x8xf32> to vector<2x1xf32>
    %99 = vector.extract_strided_slice %1 {offsets = [0, 7], sizes = [1, 1], strides = [1, 1]} : vector<44x8xf32> to vector<1x1xf32>
    %100 = vector.broadcast %98 : vector<2x1xf32> to vector<2x8xf32>
    %101 = arith.mulf %97, %100 : vector<2x8xf32>
    %cst_35 = arith.constant dense<0.000000e+00> : vector<8xf32>
    %102 = vector.multi_reduction <add>, %101, %cst_35 [0] : vector<2x8xf32> to vector<8xf32>
    %103 = vector.shape_cast %102 : vector<8xf32> to vector<1x8xf32>
    %104 = vector.broadcast %99 : vector<1x1xf32> to vector<1x8xf32>
    %105 = arith.addf %103, %104 : vector<1x8xf32>
    %c0_36 = arith.constant 0 : index
    %c0_37 = arith.constant 0 : index
    %106 = vector.load %arg5[%c0_36, %c0_37] : memref<1x8xf32, #tpu.memory_space<vmem>>, vector<1x8xf32>
    tpu.vector_store %arg5[%c0_36, %c0_37], %105 {strides = array<i32>} : memref<1x8xf32, #tpu.memory_space<vmem>>, vector<1x8xf32>,
    return
  }
}

</mosaic_0001>

<llo_original>
// kernel: net_forward.1
$region0: #{net_forward.1}
  #allocation0 [shape = 'u32[]', space=smem, size = 0x4, offset = 0x4, fixed_abs, tag = 'smem constant byte address 0x4 - core index']
  #allocation1 [shape = 'u32[144,128]{1,0:T(1,128)}', space=vmem, size = 0x12000, scoped, tag = 'internal scratch']
  %s0 = inlined_call_operand.vmem [shape: f32[8,28], index: 0, kind: input, shape index: {}]
  %s1 = inlined_call_operand.vmem [shape: f32[44,28], index: 1, kind: input, shape index: {}]
  %s2 = inlined_call_operand.vmem [shape: f32[40,44], index: 2, kind: input, shape index: {}]
  %s3 = inlined_call_operand.vmem [shape: f32[2,40], index: 3, kind: input, shape index: {}]
  %s4 = inlined_call_operand.vmem [shape: f32[44,8], index: 4, kind: input, shape index: {}]
  %s5 = inlined_call_operand.hbm [shape: f32[1,8], index: 5, kind: output, shape index: {}]
  %s6 = sld [smem:[#allocation0]]
  $region30: #{net_forward.1} parent=0
    _
  %s8 = ssub.s32 1, %s6
  %s9 = scalar_select 0, %s8, %s6
  $region1: #{net_forward.1} parent=0
    #allocation2 [shape = 'u8[512]{0}', space=vmem, size = 0x400, scoped, tag = 'output window, operand 0, single buffered']
    #allocation3 [shape = 's32[1]{0}', space=sflag, size = 0x4, scoped, tag = 'scoped memory for net_forward.1']
    %10 = vsyncpa [#allocation3], 0
    // Predicated region
    $region2: #{net_forward.1} parent=1 // pred_check
      _
    $region3: #{net_forward.1} parent=1 // pred_check_branch
      %12 = sbr.rel (0) target = $region5
    $region4: #{net_forward.1} parent=1 // pred_region
      _
    $region5: #{net_forward.1} parent=1 // pred_fallthru
      _
    // Predicated region
    $region6: #{net_forward.1} parent=1 // pred_check
      _
    $region7: #{net_forward.1} parent=1 // pred_check_branch
      %14 = sbr.rel (0) target = $region9
    $region8: #{net_forward.1} parent=1 // pred_region
      _
    $region9: #{net_forward.1} parent=1 // pred_fallthru
      _
    // Predicated region
    $region10: #{net_forward.1} parent=1 // pred_check
      _
    $region11: #{net_forward.1} parent=1 // pred_check_branch
      %16 = sbr.rel (0) target = $region13
    $region12: #{net_forward.1} parent=1 // pred_region
      _
    $region13: #{net_forward.1} parent=1 // pred_fallthru
      _
    // Predicated region
    $region14: #{net_forward.1} parent=1 // pred_check
      _
    $region15: #{net_forward.1} parent=1 // pred_check_branch
      %18 = sbr.rel (0) target = $region17
    $region16: #{net_forward.1} parent=1 // pred_region
      _
    $region17: #{net_forward.1} parent=1 // pred_fallthru
      _
    // Predicated region
    $region18: #{net_forward.1} parent=1 // pred_check
      _
    $region19: #{net_forward.1} parent=1 // pred_check_branch
      %20 = sbr.rel (0) target = $region21
    $region20: #{net_forward.1} parent=1 // pred_region
      _
    $region21: #{net_forward.1} parent=1 // pred_fallthru
      _
    %v21 = vld [vmem:[%s0] sm:$0xff]
    %v22 = vld [vmem:[%s4] sm:$0xff]
    %v23 = vld [vmem:[%s4 + $0x8] sm:$0xff]
    %v24 = vld [vmem:[%s4 + $0x10] sm:$0xff]
    %v25 = vld [vmem:[%s4 + $0x18] sm:$0xff]
    %v26 = vld [vmem:[%s4 + $0x20] sm:$0xff]
    %v27 = vld [vmem:[%s4 + $0x28] sm:$0xf]
    %v28 = vld [vmem:[%s1] sm:$0xff]
    %v29 = vld [vmem:[%s1 + $0x8] sm:$0xff]
    %v30 = vld [vmem:[%s1 + $0x10] sm:$0xff]
    %v31 = vld [vmem:[%s1 + $0x18] sm:$0xff]
    %v32 = vld [vmem:[%s1 + $0x20] sm:$0xff]
    %v33 = vld [vmem:[%s1 + $0x28] sm:$0xf]
    %vm34 = vcmask 228352
    %v36 = vsel %vm34, %v28, 0
    %v39 = vsel %vm34, %v29, 0
    %v42 = vsel %vm34, %v30, 0
    %v45 = vsel %vm34, %v31, 0
    %v48 = vsel %vm34, %v32, 0
    %v51 = vsel %vm34, %v33, 0
    %v54 = vsel %vm34, %v21, 0
    %56 = vmatprep.subr.mxu0 0.0
    %57 = vmatpush1.xpose.msra.mxu0 %v54
    %58 = vmatprep.subr.mxu0 0.0
    %59 = vmatpush1.xpose.msra.mxu0 0.0
    %60 = vmatprep.subr.mxu0 0.0
    %61 = vmatpush1.xpose.msra.mxu0 0.0
    %62 = vmatprep.subr.mxu0 0.0
    %63 = vmatpush1.xpose.msra.mxu0 0.0
    %64 = vmatprep.subr.mxu0 0.0
    %65 = vmatpush1.xpose.msra.mxu0 0.0
    %66 = vmatprep.subr.mxu0 0.0
    %67 = vmatpush1.xpose.msra.mxu0 0.0
    %68 = vmatprep.subr.mxu0 0.0
    %69 = vmatpush1.xpose.msra.mxu0 0.0
    %70 = vmatprep.subr.mxu0 0.0
    %71 = vmatpush1.xpose.msra.mxu0 0.0
    %72 = vmatprep.subr.mxu0 0.0
    %73 = vmatpush1.xpose.msra.mxu0 0.0
    %74 = vmatprep.subr.mxu0 0.0
    %75 = vmatpush1.xpose.msra.mxu0 0.0
    %76 = vmatprep.subr.mxu0 0.0
    %77 = vmatpush1.xpose.msra.mxu0 0.0
    %78 = vmatprep.subr.mxu0 0.0
    %79 = vmatpush1.xpose.msra.mxu0 0.0
    %80 = vmatprep.subr.mxu0 0.0
    %81 = vmatpush1.xpose.msra.mxu0 0.0
    %82 = vmatprep.subr.mxu0 0.0
    %83 = vmatpush1.xpose.msra.mxu0 0.0
    %84 = vmatprep.subr.mxu0 0.0
    %85 = vmatpush1.xpose.msra.mxu0 0.0
    %86 = vmatprep.subr.mxu0 0.0
    %87 = vmatpush1.xpose.msra.mxu0 0.0
    %88 = vmatprep.subr.mxu0 0.0
    %89 = vmatpush1.xpose.msra.mxu0 0.0
    %90 = vmatprep.subr.mxu0 0.0
    %91 = vmatpush1.xpose.msra.mxu0 0.0
    %92 = vmatprep.subr.mxu0 0.0
    %93 = vmatpush1.xpose.msra.mxu0 0.0
    %94 = vmatprep.subr.mxu0 0.0
    %95 = vmatpush1.xpose.msra.mxu0 0.0
    %96 = vmatprep.subr.mxu0 0.0
    %97 = vmatpush1.xpose.msra.mxu0 0.0
    %98 = vmatprep.subr.mxu0 0.0
    %99 = vmatpush1.xpose.msra.mxu0 0.0
    %100 = vmatprep.subr.mxu0 0.0
    %101 = vmatpush1.xpose.msra.mxu0 0.0
    %102 = vmatprep.subr.mxu0 0.0
    %103 = vmatpush1.xpose.msra.mxu0 0.0
    %104 = vmatprep.subr.mxu0 0.0
    %105 = vmatpush1.xpose.msra.mxu0 0.0
    %106 = vmatprep.subr.mxu0 0.0
    %107 = vmatpush1.xpose.msra.mxu0 0.0
    %108 = vmatprep.subr.mxu0 0.0
    %109 = vmatpush1.xpose.msra.mxu0 0.0
    %110 = vmatprep.subr.mxu0 0.0
    %111 = vmatpush1.xpose.msra.mxu0 0.0
    %112 = vmatprep.subr.mxu0 0.0
    %113 = vmatpush1.xpose.msra.mxu0 0.0
    %114 = vmatprep.subr.mxu0 0.0
    %115 = vmatpush1.xpose.msra.mxu0 0.0
    %116 = vmatprep.subr.mxu0 0.0
    %117 = vmatpush1.xpose.msra.mxu0 0.0
    %118 = vmatprep.subr.mxu0 0.0
    %119 = vmatpush1.xpose.msra.mxu0 0.0
    %120 = vmatprep.mubr.f32.mxu0 0.0
    %121 = vmatmul.mubr.f32.gmra.mrb[0].mxu0 %v36
    %v122 = vpop.f32.mrb[0].mxu0
    %v123 = vadd.f32 0.0, %v122
    %v124 = vpop.f32.mrb[0].mxu0
    %125 = vmatprep.mubr.f32.mxu0 0.0
    %126 = vmatmul.mubr.f32.gmra.mrb[0].mxu0 %v39
    %v127 = vpop.f32.mrb[0].mxu0
    %v128 = vadd.f32 0.0, %v127
    %v129 = vpop.f32.mrb[0].mxu0
    %130 = vmatprep.mubr.f32.mxu0 0.0
    %131 = vmatmul.mubr.f32.gmra.mrb[0].mxu0 %v42
    %v132 = vpop.f32.mrb[0].mxu0
    %v133 = vadd.f32 0.0, %v132
    %v134 = vpop.f32.mrb[0].mxu0
    %135 = vmatprep.mubr.f32.mxu0 0.0
    %136 = vmatmul.mubr.f32.gmra.mrb[0].mxu0 %v45
    %v137 = vpop.f32.mrb[0].mxu0
    %v138 = vadd.f32 0.0, %v137
    %v139 = vpop.f32.mrb[0].mxu0
    %140 = vmatprep.mubr.f32.mxu0 0.0
    %141 = vmatmul.mubr.f32.gmra.mrb[0].mxu0 %v48
    %v142 = vpop.f32.mrb[0].mxu0
    %v143 = vadd.f32 0.0, %v142
    %v144 = vpop.f32.mrb[0].mxu0
    %145 = vmatprep.mubr.f32.mxu0 0.0
    %146 = vmatmul.mubr.f32.gmra.mrb[0].mxu0 %v51
    %v147 = vpop.f32.mrb[0].mxu0
    %v148 = vadd.f32 0.0, %v147
    %v149 = vpop.f32.mrb[0].mxu0
    %150 = vdwg.mxu0
    %vm151 = vcmask 64512
    %v152 = vsel %vm151, %v123, 0.0
    %153 = vadd.xlane.f32.xlu0 %v152
    %v154 = vpop.xlane.xlu0 %153
    %v155 = vsel %vm151, %v128, 0.0
    %156 = vadd.xlane.f32.xlu0 %v155
    %v157 = vpop.xlane.xlu0 %156
    %v158 = vsel %vm151, %v133, 0.0
    %159 = vadd.xlane.f32.xlu0 %v158
    %v160 = vpop.xlane.xlu0 %159
    %v161 = vsel %vm151, %v138, 0.0
    %162 = vadd.xlane.f32.xlu0 %v161
    %v163 = vpop.xlane.xlu0 %162
    %v164 = vsel %vm151, %v143, 0.0
    %165 = vadd.xlane.f32.xlu0 %v164
    %v166 = vpop.xlane.xlu0 %165
    %vm167 = vcmask 60416
    %v168 = vsel %vm167, %v148, 0.0
    %169 = vadd.xlane.f32.xlu0 %v168
    %v170 = vpop.xlane.xlu0 %169
    %v171 = vrcp.pop 8.0
    %v172 = vmul.f32 %v154, %v171
    %v173 = vmul.f32 %v157, %v171
    %v174 = vmul.f32 %v160, %v171
    %v175 = vmul.f32 %v163, %v171
    %v176 = vmul.f32 %v166, %v171
    %v177 = vmul.f32 %v170, %v171
    %v178 = vmul.f32 %v123, %v123
    %v179 = vmul.f32 %v128, %v128
    %v180 = vmul.f32 %v133, %v133
    %v181 = vmul.f32 %v138, %v138
    %v182 = vmul.f32 %v143, %v143
    %v183 = vmul.f32 %v148, %v148
    %v184 = vsel %vm151, %v178, 0.0
    %185 = vadd.xlane.f32.xlu0 %v184
    %v186 = vpop.xlane.xlu0 %185
    %v187 = vsel %vm151, %v179, 0.0
    %188 = vadd.xlane.f32.xlu0 %v187
    %v189 = vpop.xlane.xlu0 %188
    %v190 = vsel %vm151, %v180, 0.0
    %191 = vadd.xlane.f32.xlu0 %v190
    %v192 = vpop.xlane.xlu0 %191
    %v193 = vsel %vm151, %v181, 0.0
    %194 = vadd.xlane.f32.xlu0 %v193
    %v195 = vpop.xlane.xlu0 %194
    %v196 = vsel %vm151, %v182, 0.0
    %197 = vadd.xlane.f32.xlu0 %v196
    %v198 = vpop.xlane.xlu0 %197
    %v199 = vsel %vm167, %v183, 0.0
    %200 = vadd.xlane.f32.xlu0 %v199
    %v201 = vpop.xlane.xlu0 %200
    %v202 = vmul.f32 %v186, %v171
    %v203 = vmul.f32 %v189, %v171
    %v204 = vmul.f32 %v192, %v171
    %v205 = vmul.f32 %v195, %v171
    %v206 = vmul.f32 %v198, %v171
    %v207 = vmul.f32 %v201, %v171
    %v208 = vmul.f32 %v172, %v172
    %v209 = vmul.f32 %v173, %v173
    %v210 = vmul.f32 %v174, %v174
    %v211 = vmul.f32 %v175, %v175
    %v212 = vmul.f32 %v176, %v176
    %v213 = vmul.f32 %v177, %v177
    %v214 = vsub.f32 %v202, %v208
    %v215 = vsub.f32 %v203, %v209
    %v216 = vsub.f32 %v204, %v210
    %v217 = vsub.f32 %v205, %v211
    %v218 = vsub.f32 %v206, %v212
    %v219 = vsub.f32 %v207, %v213
    %v220 = vmax.f32 %v214, 0.0
    %v221 = vmax.f32 %v215, 0.0
    %v222 = vmax.f32 %v216, 0.0
    %v223 = vmax.f32 %v217, 0.0
    %v224 = vmax.f32 %v218, 0.0
    %v225 = vmax.f32 %v219, 0.0
    %v226 = vadd.f32 %v220, 1e-05
    %v227 = vadd.f32 %v221, 1e-05
    %v228 = vadd.f32 %v222, 1e-05
    %v229 = vadd.f32 %v223, 1e-05
    %v230 = vadd.f32 %v224, 1e-05
    %v231 = vadd.f32 %v225, 1e-05
    %v232 = vrsqrt.pop %v226
    %v233 = vrsqrt.pop %v227
    %v234 = vrsqrt.pop %v228
    %v235 = vrsqrt.pop %v229
    %v236 = vrsqrt.pop %v230
    %v237 = vrsqrt.pop %v231
    %v238 = vmul.f32 %v22, %v232
    %v239 = vmul.f32 %v23, %v233
    %v240 = vmul.f32 %v24, %v234
    %v241 = vmul.f32 %v25, %v235
    %v242 = vmul.f32 %v26, %v236
    %v243 = vmul.f32 %v27, %v237
    %v244 = vmul.f32 %v172, %v238
    %v245 = vmul.f32 %v173, %v239
    %v246 = vmul.f32 %v174, %v240
    %v247 = vmul.f32 %v175, %v241
    %v248 = vmul.f32 %v176, %v242
    %v249 = vmul.f32 %v177, %v243
    %256 = vrot.lane.b32.xlu0 %v244, 1
    %v257 = vpop.permute.xlu0 %256
    %258 = vrot.lane.b32.xlu0 %v245, 1
    %v259 = vpop.permute.xlu0 %258
    %260 = vrot.lane.b32.xlu0 %v246, 1
    %v261 = vpop.permute.xlu0 %260
    %262 = vrot.lane.b32.xlu0 %v247, 1
    %v263 = vpop.permute.xlu0 %262
    %264 = vrot.lane.b32.xlu0 %v248, 1
    %v265 = vpop.permute.xlu0 %264
    %266 = vrot.lane.b32.xlu0 %v249, 1
    %v267 = vpop.permute.xlu0 %266
    %v274 = vsub.f32 %v22, %v257
    %v275 = vsub.f32 %v23, %v259
    %v276 = vsub.f32 %v24, %v261
    %v277 = vsub.f32 %v25, %v263
    %v278 = vsub.f32 %v26, %v265
    %v279 = vsub.f32 %v27, %v267
    %281 = vset.pattern.permute.xlu0 0
    %282 = vperm.xlu0 %281, %v238
    %v283 = vpop.permute.xlu0 %282
    %286 = vset.pattern.permute.xlu0 0
    %287 = vperm.xlu0 %286, %v239
    %v288 = vpop.permute.xlu0 %287
    %291 = vset.pattern.permute.xlu0 0
    %292 = vperm.xlu0 %291, %v240
    %v293 = vpop.permute.xlu0 %292
    %296 = vset.pattern.permute.xlu0 0
    %297 = vperm.xlu0 %296, %v241
    %v298 = vpop.permute.xlu0 %297
    %301 = vset.pattern.permute.xlu0 0
    %302 = vperm.xlu0 %301, %v242
    %v303 = vpop.permute.xlu0 %302
    %306 = vset.pattern.permute.xlu0 0
    %307 = vperm.xlu0 %306, %v243
    %v308 = vpop.permute.xlu0 %307
    %v310 = vmul.f32 %v123, %v283
    %v311 = vmul.f32 %v128, %v288
    %v312 = vmul.f32 %v133, %v293
    %v313 = vmul.f32 %v138, %v298
    %v314 = vmul.f32 %v143, %v303
    %v315 = vmul.f32 %v148, %v308
    %317 = vset.pattern.permute.xlu0 1
    %318 = vperm.xlu0 %317, %v274
    %v319 = vpop.permute.xlu0 %318
    %322 = vset.pattern.permute.xlu0 1
    %323 = vperm.xlu0 %322, %v275
    %v324 = vpop.permute.xlu0 %323
    %327 = vset.pattern.permute.xlu0 1
    %328 = vperm.xlu0 %327, %v276
    %v329 = vpop.permute.xlu0 %328
    %332 = vset.pattern.permute.xlu0 1
    %333 = vperm.xlu0 %332, %v277
    %v334 = vpop.permute.xlu0 %333
    %337 = vset.pattern.permute.xlu0 1
    %338 = vperm.xlu0 %337, %v278
    %v339 = vpop.permute.xlu0 %338
    %342 = vset.pattern.permute.xlu0 1
    %343 = vperm.xlu0 %342, %v279
    %v344 = vpop.permute.xlu0 %343
    %v346 = vadd.f32 %v310, %v319
    %v347 = vadd.f32 %v311, %v324
    %v348 = vadd.f32 %v312, %v329
    %v349 = vadd.f32 %v313, %v334
    %v350 = vadd.f32 %v314, %v339
    %v351 = vadd.f32 %v315, %v344
    %vm352 = vcmp.ge.f32.partialorder %v346, 0.0
    %vm353 = vcmp.ge.f32.partialorder %v347, 0.0
    %vm354 = vcmp.ge.f32.partialorder %v348, 0.0
    %vm355 = vcmp.ge.f32.partialorder %v349, 0.0
    %vm356 = vcmp.ge.f32.partialorder %v350, 0.0
    %vm357 = vcmp.ge.f32.partialorder %v351, 0.0
    %v358 = vmul.f32 %v346, 0.01
    %v359 = vmul.f32 %v347, 0.01
    %v360 = vmul.f32 %v348, 0.01
    %v361 = vmul.f32 %v349, 0.01
    %v362 = vmul.f32 %v350, 0.01
    %v363 = vmul.f32 %v351, 0.01
    %v364 = vsel %vm352, %v346, %v358
    %v365 = vsel %vm353, %v347, %v359
    %v366 = vsel %vm354, %v348, %v360
    %v367 = vsel %vm355, %v349, %v361
    %v368 = vsel %vm356, %v350, %v362
    %v369 = vsel %vm357, %v351, %v363
    %v370 = vld [vmem:[%s2] sm:$0xff]
    %v371 = vld [vmem:[%s2 + $0x8] sm:$0xff]
    %v372 = vld [vmem:[%s2 + $0x10] sm:$0xff]
    %v373 = vld [vmem:[%s2 + $0x18] sm:$0xff]
    %v374 = vld [vmem:[%s2 + $0x20] sm:$0xff]
    %vm375 = vcmask 359424
    %v377 = vsel %vm375, %v370, 0
    %v380 = vsel %vm375, %v371, 0
    %v383 = vsel %vm375, %v372, 0
    %v386 = vsel %vm375, %v373, 0
    %v389 = vsel %vm375, %v374, 0
    %vm391 = vcmask 1043456
    %v393 = vsel %vm391, %v369, 0
    %395 = vmatprep.subr.mxu0 0.0
    %396 = vmatpush1.msra.mxu0 %v364
    %397 = vmatprep.subr.mxu0 0.0
    %398 = vmatpush1.msra.mxu0 %v365
    %399 = vmatprep.subr.mxu0 0.0
    %400 = vmatpush1.msra.mxu0 %v366
    %401 = vmatprep.subr.mxu0 0.0
    %402 = vmatpush1.msra.mxu0 %v367
    %403 = vmatprep.subr.mxu0 0.0
    %404 = vmatpush1.msra.mxu0 %v368
    %405 = vmatprep.subr.mxu0 0.0
    %406 = vmatpush1.msra.mxu0 %v393
    %407 = vmatprep.subr.mxu0 0.0
    %408 = vmatpush1.msra.mxu0 0.0
    %409 = vmatprep.subr.mxu0 0.0
    %410 = vmatpush1.msra.mxu0 0.0
    %411 = vmatprep.subr.mxu0 0.0
    %412 = vmatpush1.msra.mxu0 0.0
    %413 = vmatprep.subr.mxu0 0.0
    %414 = vmatpush1.msra.mxu0 0.0
    %415 = vmatprep.subr.mxu0 0.0
    %416 = vmatpush1.msra.mxu0 0.0
    %417 = vmatprep.subr.mxu0 0.0
    %418 = vmatpush1.msra.mxu0 0.0
    %419 = vmatprep.subr.mxu0 0.0
    %420 = vmatpush1.msra.mxu0 0.0
    %421 = vmatprep.subr.mxu0 0.0
    %422 = vmatpush1.msra.mxu0 0.0
    %423 = vmatprep.subr.mxu0 0.0
    %424 = vmatpush1.msra.mxu0 0.0
    %425 = vmatprep.subr.mxu0 0.0
    %426 = vmatpush1.msra.mxu0 0.0
    %427 = vmatprep.subr.mxu0 0.0
    %428 = vmatpush1.msra.mxu0 0.0
    %429 = vmatprep.subr.mxu0 0.0
    %430 = vmatpush1.msra.mxu0 0.0
    %431 = vmatprep.subr.mxu0 0.0
    %432 = vmatpush1.msra.mxu0 0.0
    %433 = vmatprep.subr.mxu0 0.0
    %434 = vmatpush1.msra.mxu0 0.0
    %435 = vmatprep.subr.mxu0 0.0
    %436 = vmatpush1.msra.mxu0 0.0
    %437 = vmatprep.subr.mxu0 0.0
    %438 = vmatpush1.msra.mxu0 0.0
    %439 = vmatprep.subr.mxu0 0.0
    %440 = vmatpush1.msra.mxu0 0.0
    %441 = vmatprep.subr.mxu0 0.0
    %442 = vmatpush1.msra.mxu0 0.0
    %443 = vmatprep.subr.mxu0 0.0
    %444 = vmatpush1.msra.mxu0 0.0
    %445 = vmatprep.subr.mxu0 0.0
    %446 = vmatpush1.msra.mxu0 0.0
    %447 = vmatprep.subr.mxu0 0.0
    %448 = vmatpush1.msra.mxu0 0.0
    %449 = vmatprep.subr.mxu0 0.0
    %450 = vmatpush1.msra.mxu0 0.0
    %451 = vmatprep.subr.mxu0 0.0
    %452 = vmatpush1.msra.mxu0 0.0
    %453 = vmatprep.subr.mxu0 0.0
    %454 = vmatpush1.msra.mxu0 0.0
    %455 = vmatprep.subr.mxu0 0.0
    %456 = vmatpush1.msra.mxu0 0.0
    %457 = vmatprep.subr.mxu0 0.0
    %458 = vmatpush1.msra.mxu0 0.0
    %459 = vmatprep.mubr.f32.mxu0 0.0
    %460 = vmatmul.mubr.f32.gmra.mrb[0].mxu0 %v377
    %v461 = vpop.f32.mrb[0].mxu0
    %v462 = vadd.f32 0.0, %v461
    %v463 = vpop.f32.mrb[0].mxu0
    %464 = vmatprep.mubr.f32.mxu0 0.0
    %465 = vmatmul.mubr.f32.gmra.mrb[0].mxu0 %v380
    %v466 = vpop.f32.mrb[0].mxu0
    %v467 = vadd.f32 0.0, %v466
    %v468 = vpop.f32.mrb[0].mxu0
    %469 = vmatprep.mubr.f32.mxu0 0.0
    %470 = vmatmul.mubr.f32.gmra.mrb[0].mxu0 %v383
    %v471 = vpop.f32.mrb[0].mxu0
    %v472 = vadd.f32 0.0, %v471
    %v473 = vpop.f32.mrb[0].mxu0
    %474 = vmatprep.mubr.f32.mxu0 0.0
    %475 = vmatmul.mubr.f32.gmra.mrb[0].mxu0 %v386
    %v476 = vpop.f32.mrb[0].mxu0
    %v477 = vadd.f32 0.0, %v476
    %v478 = vpop.f32.mrb[0].mxu0
    %479 = vmatprep.mubr.f32.mxu0 0.0
    %480 = vmatmul.mubr.f32.gmra.mrb[0].mxu0 %v389
    %v481 = vpop.f32.mrb[0].mxu0
    %v482 = vadd.f32 0.0, %v481
    %v483 = vpop.f32.mrb[0].mxu0
    %484 = vdwg.mxu0
    %v485 = vsel %vm151, %v462, 0.0
    %486 = vadd.xlane.f32.xlu0 %v485
    %v487 = vpop.xlane.xlu0 %486
    %v488 = vsel %vm151, %v467, 0.0
    %489 = vadd.xlane.f32.xlu0 %v488
    %v490 = vpop.xlane.xlu0 %489
    %v491 = vsel %vm151, %v472, 0.0
    %492 = vadd.xlane.f32.xlu0 %v491
    %v493 = vpop.xlane.xlu0 %492
    %v494 = vsel %vm151, %v477, 0.0
    %495 = vadd.xlane.f32.xlu0 %v494
    %v496 = vpop.xlane.xlu0 %495
    %v497 = vsel %vm151, %v482, 0.0
    %498 = vadd.xlane.f32.xlu0 %v497
    %v499 = vpop.xlane.xlu0 %498
    %v500 = vmul.f32 %v487, %v171
    %v501 = vmul.f32 %v490, %v171
    %v502 = vmul.f32 %v493, %v171
    %v503 = vmul.f32 %v496, %v171
    %v504 = vmul.f32 %v499, %v171
    %v505 = vmul.f32 %v462, %v462
    %v506 = vmul.f32 %v467, %v467
    %v507 = vmul.f32 %v472, %v472
    %v508 = vmul.f32 %v477, %v477
    %v509 = vmul.f32 %v482, %v482
    %v510 = vsel %vm151, %v505, 0.0
    %511 = vadd.xlane.f32.xlu0 %v510
    %v512 = vpop.xlane.xlu0 %511
    %v513 = vsel %vm151, %v506, 0.0
    %514 = vadd.xlane.f32.xlu0 %v513
    %v515 = vpop.xlane.xlu0 %514
    %v516 = vsel %vm151, %v507, 0.0
    %517 = vadd.xlane.f32.xlu0 %v516
    %v518 = vpop.xlane.xlu0 %517
    %v519 = vsel %vm151, %v508, 0.0
    %520 = vadd.xlane.f32.xlu0 %v519
    %v521 = vpop.xlane.xlu0 %520
    %v522 = vsel %vm151, %v509, 0.0
    %523 = vadd.xlane.f32.xlu0 %v522
    %v524 = vpop.xlane.xlu0 %523
    %v525 = vmul.f32 %v512, %v171
    %v526 = vmul.f32 %v515, %v171
    %v527 = vmul.f32 %v518, %v171
    %v528 = vmul.f32 %v521, %v171
    %v529 = vmul.f32 %v524, %v171
    %v530 = vmul.f32 %v500, %v500
    %v531 = vmul.f32 %v501, %v501
    %v532 = vmul.f32 %v502, %v502
    %v533 = vmul.f32 %v503, %v503
    %v534 = vmul.f32 %v504, %v504
    %v535 = vsub.f32 %v525, %v530
    %v536 = vsub.f32 %v526, %v531
    %v537 = vsub.f32 %v527, %v532
    %v538 = vsub.f32 %v528, %v533
    %v539 = vsub.f32 %v529, %v534
    %v540 = vmax.f32 %v535, 0.0
    %v541 = vmax.f32 %v536, 0.0
    %v542 = vmax.f32 %v537, 0.0
    %v543 = vmax.f32 %v538, 0.0
    %v544 = vmax.f32 %v539, 0.0
    %v545 = vadd.f32 %v540, 1e-05
    %v546 = vadd.f32 %v541, 1e-05
    %v547 = vadd.f32 %v542, 1e-05
    %v548 = vadd.f32 %v543, 1e-05
    %v549 = vadd.f32 %v544, 1e-05
    %v550 = vrsqrt.pop %v545
    %v551 = vrsqrt.pop %v546
    %v552 = vrsqrt.pop %v547
    %v553 = vrsqrt.pop %v548
    %v554 = vrsqrt.pop %v549
    %v555 = vmul.f32 %v22, %v550
    %v556 = vmul.f32 %v23, %v551
    %v557 = vmul.f32 %v24, %v552
    %v558 = vmul.f32 %v25, %v553
    %v559 = vmul.f32 %v26, %v554
    %v560 = vmul.f32 %v500, %v555
    %v561 = vmul.f32 %v501, %v556
    %v562 = vmul.f32 %v502, %v557
    %v563 = vmul.f32 %v503, %v558
    %v564 = vmul.f32 %v504, %v559
    %570 = vrot.lane.b32.xlu0 %v560, 1
    %v571 = vpop.permute.xlu0 %570
    %572 = vrot.lane.b32.xlu0 %v561, 1
    %v573 = vpop.permute.xlu0 %572
    %574 = vrot.lane.b32.xlu0 %v562, 1
    %v575 = vpop.permute.xlu0 %574
    %576 = vrot.lane.b32.xlu0 %v563, 1
    %v577 = vpop.permute.xlu0 %576
    %578 = vrot.lane.b32.xlu0 %v564, 1
    %v579 = vpop.permute.xlu0 %578
    %v585 = vsub.f32 %v22, %v571
    %v586 = vsub.f32 %v23, %v573
    %v587 = vsub.f32 %v24, %v575
    %v588 = vsub.f32 %v25, %v577
    %v589 = vsub.f32 %v26, %v579
    %591 = vset.pattern.permute.xlu0 2
    %592 = vperm.xlu0 %591, %v555
    %v593 = vpop.permute.xlu0 %592
    %596 = vset.pattern.permute.xlu0 2
    %597 = vperm.xlu0 %596, %v556
    %v598 = vpop.permute.xlu0 %597
    %601 = vset.pattern.permute.xlu0 2
    %602 = vperm.xlu0 %601, %v557
    %v603 = vpop.permute.xlu0 %602
    %606 = vset.pattern.permute.xlu0 2
    %607 = vperm.xlu0 %606, %v558
    %v608 = vpop.permute.xlu0 %607
    %611 = vset.pattern.permute.xlu0 2
    %612 = vperm.xlu0 %611, %v559
    %v613 = vpop.permute.xlu0 %612
    %v615 = vmul.f32 %v462, %v593
    %v616 = vmul.f32 %v467, %v598
    %v617 = vmul.f32 %v472, %v603
    %v618 = vmul.f32 %v477, %v608
    %v619 = vmul.f32 %v482, %v613
    %621 = vset.pattern.permute.xlu0 3
    %622 = vperm.xlu0 %621, %v585
    %v623 = vpop.permute.xlu0 %622
    %626 = vset.pattern.permute.xlu0 3
    %627 = vperm.xlu0 %626, %v586
    %v628 = vpop.permute.xlu0 %627
    %631 = vset.pattern.permute.xlu0 3
    %632 = vperm.xlu0 %631, %v587
    %v633 = vpop.permute.xlu0 %632
    %636 = vset.pattern.permute.xlu0 3
    %637 = vperm.xlu0 %636, %v588
    %v638 = vpop.permute.xlu0 %637
    %641 = vset.pattern.permute.xlu0 3
    %642 = vperm.xlu0 %641, %v589
    %v643 = vpop.permute.xlu0 %642
    %v645 = vadd.f32 %v615, %v623
    %v646 = vadd.f32 %v616, %v628
    %v647 = vadd.f32 %v617, %v633
    %v648 = vadd.f32 %v618, %v638
    %v649 = vadd.f32 %v619, %v643
    %vm650 = vcmp.ge.f32.partialorder %v645, 0.0
    %vm651 = vcmp.ge.f32.partialorder %v646, 0.0
    %vm652 = vcmp.ge.f32.partialorder %v647, 0.0
    %vm653 = vcmp.ge.f32.partialorder %v648, 0.0
    %vm654 = vcmp.ge.f32.partialorder %v649, 0.0
    %v655 = vmul.f32 %v645, 0.01
    %v656 = vmul.f32 %v646, 0.01
    %v657 = vmul.f32 %v647, 0.01
    %v658 = vmul.f32 %v648, 0.01
    %v659 = vmul.f32 %v649, 0.01
    %v660 = vsel %vm650, %v645, %v655
    %v661 = vsel %vm651, %v646, %v656
    %v662 = vsel %vm652, %v647, %v657
    %v663 = vsel %vm653, %v648, %v658
    %v664 = vsel %vm654, %v649, %v659
    %v665 = vld [vmem:[%s3] sm:$0x3]
    %vm666 = vcmask 326656
    %v668 = vsel %vm666, %v665, 0
    %670 = vmatprep.subr.mxu0 0.0
    %671 = vmatpush1.msra.mxu0 %v660
    %672 = vmatprep.subr.mxu0 0.0
    %673 = vmatpush1.msra.mxu0 %v661
    %674 = vmatprep.subr.mxu0 0.0
    %675 = vmatpush1.msra.mxu0 %v662
    %676 = vmatprep.subr.mxu0 0.0
    %677 = vmatpush1.msra.mxu0 %v663
    %678 = vmatprep.subr.mxu0 0.0
    %679 = vmatpush1.msra.mxu0 %v664
    %680 = vmatprep.subr.mxu0 0.0
    %681 = vmatpush1.msra.mxu0 0.0
    %682 = vmatprep.subr.mxu0 0.0
    %683 = vmatpush1.msra.mxu0 0.0
    %684 = vmatprep.subr.mxu0 0.0
    %685 = vmatpush1.msra.mxu0 0.0
    %686 = vmatprep.subr.mxu0 0.0
    %687 = vmatpush1.msra.mxu0 0.0
    %688 = vmatprep.subr.mxu0 0.0
    %689 = vmatpush1.msra.mxu0 0.0
    %690 = vmatprep.subr.mxu0 0.0
    %691 = vmatpush1.msra.mxu0 0.0
    %692 = vmatprep.subr.mxu0 0.0
    %693 = vmatpush1.msra.mxu0 0.0
    %694 = vmatprep.subr.mxu0 0.0
    %695 = vmatpush1.msra.mxu0 0.0
    %696 = vmatprep.subr.mxu0 0.0
    %697 = vmatpush1.msra.mxu0 0.0
    %698 = vmatprep.subr.mxu0 0.0
    %699 = vmatpush1.msra.mxu0 0.0
    %700 = vmatprep.subr.mxu0 0.0
    %701 = vmatpush1.msra.mxu0 0.0
    %702 = vmatprep.subr.mxu0 0.0
    %703 = vmatpush1.msra.mxu0 0.0
    %704 = vmatprep.subr.mxu0 0.0
    %705 = vmatpush1.msra.mxu0 0.0
    %706 = vmatprep.subr.mxu0 0.0
    %707 = vmatpush1.msra.mxu0 0.0
    %708 = vmatprep.subr.mxu0 0.0
    %709 = vmatpush1.msra.mxu0 0.0
    %710 = vmatprep.subr.mxu0 0.0
    %711 = vmatpush1.msra.mxu0 0.0
    %712 = vmatprep.subr.mxu0 0.0
    %713 = vmatpush1.msra.mxu0 0.0
    %714 = vmatprep.subr.mxu0 0.0
    %715 = vmatpush1.msra.mxu0 0.0
    %716 = vmatprep.subr.mxu0 0.0
    %717 = vmatpush1.msra.mxu0 0.0
    %718 = vmatprep.subr.mxu0 0.0
    %719 = vmatpush1.msra.mxu0 0.0
    %720 = vmatprep.subr.mxu0 0.0
    %721 = vmatpush1.msra.mxu0 0.0
    %722 = vmatprep.subr.mxu0 0.0
    %723 = vmatpush1.msra.mxu0 0.0
    %724 = vmatprep.subr.mxu0 0.0
    %725 = vmatpush1.msra.mxu0 0.0
    %726 = vmatprep.subr.mxu0 0.0
    %727 = vmatpush1.msra.mxu0 0.0
    %728 = vmatprep.subr.mxu0 0.0
    %729 = vmatpush1.msra.mxu0 0.0
    %730 = vmatprep.subr.mxu0 0.0
    %731 = vmatpush1.msra.mxu0 0.0
    %732 = vmatprep.subr.mxu0 0.0
    %733 = vmatpush1.msra.mxu0 0.0
    %734 = vmatprep.mubr.f32.mxu0 0.0
    %735 = vmatmul.mubr.f32.gmra.mrb[0].mxu0 %v668
    %v736 = vpop.f32.mrb[0].mxu0
    %v737 = vadd.f32 0.0, %v736
    %v738 = vpop.f32.mrb[0].mxu0
    %739 = vdwg.mxu0
    %vm740 = vcmask 58368
    %v741 = vsel %vm740, %v737, 0.0
    %742 = vadd.xlane.f32.xlu0 %v741
    %v743 = vpop.xlane.xlu0 %742
    %v744 = vmul.f32 %v743, %v171
    %v745 = vmul.f32 %v737, %v737
    %v746 = vsel %vm740, %v745, 0.0
    %747 = vadd.xlane.f32.xlu0 %v746
    %v748 = vpop.xlane.xlu0 %747
    %v749 = vmul.f32 %v748, %v171
    %v750 = vmul.f32 %v744, %v744
    %v751 = vsub.f32 %v749, %v750
    %v752 = vmax.f32 %v751, 0.0
    %v753 = vadd.f32 %v752, 1e-05
    %v754 = vrsqrt.pop %v753
    %v755 = vmul.f32 %v22, %v754
    %v756 = vmul.f32 %v744, %v755
    %758 = vrot.lane.b32.xlu0 %v756, 1
    %v759 = vpop.permute.xlu0 %758
    %v761 = vsub.f32 %v22, %v759
    %763 = vset.pattern.permute.xlu0 4
    %764 = vperm.xlu0 %763, %v755
    %v765 = vpop.permute.xlu0 %764
    %v767 = vmul.f32 %v737, %v765
    %769 = vset.pattern.permute.xlu0 5
    %770 = vperm.xlu0 %769, %v761
    %v771 = vpop.permute.xlu0 %770
    %v773 = vadd.f32 %v767, %v771
    %vm774 = vcmp.ge.f32.partialorder %v773, 0.0
    %v775 = vmul.f32 %v773, 0.01
    %v776 = vsel %vm774, %v773, %v775
    %778 = vset.pattern.permute.xlu0 6
    %779 = vperm.xlu0 %778, %v22
    %v780 = vpop.permute.xlu0 %779
    %v782 = vmul.f32 %v776, %v780
    %v783 = vsel %vm740, %v782, 0.0
    %v784 = vrot.slane %v783, 4
    %v785 = vadd.f32 %v783, %v784
    %v786 = vrot.slane %v785, 2
    %v787 = vadd.f32 %v785, %v786
    %v788 = vrot.slane %v787, 1
    %v789 = vadd.f32 %v787, %v788
    %790 = vset.pattern.permute.xlu0 7
    %791 = vperm.xlu0 %790, %v22
    %v792 = vpop.permute.xlu0 %791
    %v794 = vadd.f32 %v789, %v792
    %vm795 = vcmask 57344
    %796 = vst.msk [vmem:[#allocation2] sm:$0x1] %vm795, %v794
    // Predicated region
    $region22: #{net_forward.1} parent=1 // pred_check
      _
    $region23: #{net_forward.1} parent=1 // pred_check_branch
      %798 = sbr.rel (0) target = $region25
    $region24: #{net_forward.1} parent=1 // pred_region
      %s800 = ssub.s32 16, 16
      %801 = vsyncadd [#allocation3], %s800
      %s803 = sshll.u32 [#allocation2], 4
      %s804 = int_to_ptr.vmem [resolvable:$true] %s803
      %806 = dma.vmem_to_hbm [thread:$0]  %s804, 16, %s5, [#allocation3]
    $region25: #{net_forward.1} parent=1 // pred_fallthru
      _
    // Predicated region
    $region26: #{net_forward.1} parent=1 // pred_check
      _
    $region27: #{net_forward.1} parent=1 // pred_check_branch
      %808 = sbr.rel (0) target = $region29
    $region28: #{net_forward.1} parent=1 // pred_region
      %809 = dma.done [#allocation3], 16
    $region29: #{net_forward.1} parent=1 // pred_fallthru
      _
    %810 = vsyncpa [#allocation3], 1

</llo_original>
